<compile_context>
chip_gen: v7x
topology: tpu7x:2x2x1
jax: 0.10.0
libtpu: 0.0.40
codegen_flags: <defaults>
</compile_context>

<pallas_src>
import functools
from typing import Dict, List

import jax
import jax.numpy as jnp
from jax.experimental import pallas as pl
from jax.experimental.pallas import tpu as pltpu

_LANE = 128
_WEIGHT_SINGLE_BUFFER = {"ok": True}   # fallback flag if pl.Buffered(1) is rejected


# ---------------------------------------------------------------------------
# Kernel
# ---------------------------------------------------------------------------
def _mlp_kernel(*refs, activation: str, n_layers: int):
    """refs = (x_ref, W0, b0, W1, b1, ..., out_ref).

    x streams in at its natural dtype and is cast to bf16 in-kernel (saves a
    wrapper HBM pad/cast pass).  Weights are bf16 (MXU), biases f32; matmul
    accumulation, bias add and the nonlinearity run in f32; hidden results are
    cast back to bf16 for the next MXU pass.  Hidden activations live only in
    vregs, so padding hidden widths to 128 costs no HBM traffic.
    """
    x_ref = refs[0]
    out_ref = refs[-1]
    param_refs = refs[1:-1]

    if activation == "tanh":
        act = jnp.tanh           # kept in f32: correct on v5e (no bf16 EUP), matches reference
    else:
        act = lambda v: jnp.maximum(v, 0.0)

    h = x_ref[...].astype(jnp.bfloat16)              # (TILE_B, obs_dim)
    for layer in range(n_layers):
        w = param_refs[2 * layer][...]               # (in_l, out_pad_l) bf16
        b = param_refs[2 * layer + 1][...]           # (1, out_pad_l) f32
        y = jnp.dot(h, w, preferred_element_type=jnp.float32) + b
        if layer < n_layers - 1:
            h = act(y).astype(jnp.bfloat16)
        else:
            h = y                                    # final layer: linear, f32
    out_ref[...] = h.astype(out_ref.dtype)           # lane-dense (128-multiple) store


# ---------------------------------------------------------------------------
# Params
# ---------------------------------------------------------------------------
def make_mlp_params(key, config: Dict) -> List[jnp.ndarray]:
    """f32 params matching PyTorch nn.Linear default init ranges (W transposed: (in,out))."""
    sizes = [config["obs_dim"]] + list(config["sizes"]) + [config["action_dim"]]
    params = []
    for h in range(len(sizes) - 1):
        fan_in, fan_out = sizes[h], sizes[h + 1]
        key, kw, kb = jax.random.split(key, 3)
        bound = 1.0 / jnp.sqrt(fan_in)
        w = jax.random.uniform(kw, (fan_in, fan_out), jnp.float32, -bound, bound)
        b = jax.random.uniform(kb, (1, fan_out), jnp.float32, -bound, bound)
        params += [w, b]
    return params


def _round_up(v: int, m: int) -> int:
    return ((v + m - 1) // m) * m


def _layer_dims(config: Dict):
    sizes = [config["obs_dim"]] + list(config["sizes"]) + [config["action_dim"]]
    n_layers = len(sizes) - 1
    # contraction dims stay natural for layer 0 (obs_dim); later contraction dims
    # equal the previous layer's padded output.  Output dims pad to 128 lanes.
    in_dims = [sizes[0]] + [_round_up(s, _LANE) for s in sizes[1:-1]]
    out_dims = [_round_up(s, _LANE) for s in sizes[1:]]
    return sizes, n_layers, in_dims, out_dims


def prepare_mlp_params(params: List[jnp.ndarray], config: Dict) -> List[jnp.ndarray]:
    """Pad output dims to 128 and cast weights to bf16 ONCE (outside the hot path)."""
    _, n_layers, in_dims, out_dims = _layer_dims(config)
    prepped = []
    for l in range(n_layers):
        w, b = params[2 * l], jnp.reshape(params[2 * l + 1], (1, -1))
        w_p = jnp.pad(w, ((0, in_dims[l] - w.shape[0]),
                          (0, out_dims[l] - w.shape[1]))).astype(jnp.bfloat16)
        b_p = jnp.pad(b, ((0, 0), (0, out_dims[l] - b.shape[1])))   # stays f32
        prepped += [w_p, b_p]
    return prepped


# ---------------------------------------------------------------------------
# Per-chip budget
# ---------------------------------------------------------------------------
def _tpu_budget():
    """(vmem_limit_bytes, tensorcores_per_chip) adapted to the chip generation."""
    phys = 128 << 20
    cores = 0
    try:
        info = pltpu.get_tpu_info()
        phys = int(getattr(info, "vmem_capacity_bytes", 0) or phys)
        for name in ("num_cores", "core_count", "num_tensorcores", "tensorcore_count"):
            v = getattr(info, name, None)
            if v:
                cores = int(v)
                break
    except Exception:
        pass
    if phys <= (64 << 20):            # v7x-class TC (64 MiB): leave compiler-scratch headroom
        cap = 52 << 20
        cores = cores or 2
    else:                             # v5e / v6e (128 MiB): use most of it
        cap = 104 << 20
        cores = cores or 1
    return cap, cores


# ---------------------------------------------------------------------------
# Wrapper
# ---------------------------------------------------------------------------
def mlp_forward(x, prepped_params: List[jnp.ndarray], config: Dict,
                tile_b: int = None, out_dtype=jnp.float32):
    batch, obs_dim = x.shape
    activation = config.get("activation", "tanh").lower()
    if activation not in ("tanh", "relu"):
        raise ValueError("activation type not recognized.")
    if obs_dim != config["obs_dim"]:
        raise ValueError("x last dim does not match config['obs_dim'].")

    sizes, n_layers, in_dims, out_dims = _layer_dims(config)
    assert len(prepped_params) == 2 * n_layers, "params not prepared for this config"
    assert prepped_params[0].shape == (in_dims[0], out_dims[0]), "params/config mismatch"
    action_dim = config["action_dim"]

    vmem_cap, n_cores = _tpu_budget()
    out_itemsize = jnp.dtype(out_dtype).itemsize

    # Weight/bias residency (single-buffered: constant block index).
    w_bytes = sum(in_dims[l] * out_dims[l] * 2 + out_dims[l] * 4 for l in range(n_layers))
    # TODO(synk): if w_bytes ever exceeds the VMEM budget (huge hidden sizes), add a
    # layer-output tiling fallback (second 'arbitrary' grid axis) instead of relying
    # on full weight residency.  Not needed at these sizes.

    max_w = max(out_dims)

    def _vmem_estimate(tb):
        x_tiles = 2 * tb * obs_dim * x.dtype.itemsize        # double-buffered input stream
        out_tiles = 2 * tb * out_dims[-1] * out_itemsize      # double-buffered output stream
        act_live = 2 * tb * max_w * 6                         # y(f32)+h(bf16) live at once, 2x margin
        return x_tiles + out_tiles + w_bytes + act_live + (4 << 20)

    # ---- tile selection ----
    if tile_b is None:
        tile_b = 1024 if vmem_cap > (80 << 20) else 512       # big tiles amortize grid overhead
    if n_cores >= 2 and batch > 16:
        # ensure >= 2 grid steps so the 'parallel' batch axis can split across both TCs
        tile_b = min(tile_b, _round_up(-(-batch // 2), 16))
    tile_b = max(16, (min(tile_b, _round_up(batch, 16)) // 16) * 16)
    while tile_b > 16 and _vmem_estimate(tile_b) > vmem_cap:
        tile_b = max(16, ((tile_b // 2) // 16) * 16)
    if tile_b >= batch:
        tile_b = batch                                        # single full-extent block
    grid = (-(-batch // tile_b),)                             # ragged last block is masked

    kernel = functools.partial(_mlp_kernel, activation=activation, n_layers=n_layers)

    def _build_specs(single_buffer_weights: bool):
        # x / out stream along the batch grid; params are VMEM-resident
        # (constant index_map -> fetched once), optionally single-buffered.
        kw = {"pipeline_mode": pl.Buffered(1)} if single_buffer_weights else {}
        specs = [pl.BlockSpec((tile_b, obs_dim), lambda i: (i, 0))]
        for l in range(n_layers):
            specs.append(pl.BlockSpec((in_dims[l], out_dims[l]), lambda i: (0, 0), **kw))
            specs.append(pl.BlockSpec((1, out_dims[l]), lambda i: (0, 0), **kw))
        return specs

    out_spec = pl.BlockSpec((tile_b, out_dims[-1]), lambda i: (i, 0))

    def _run(single_buffer_weights: bool):
        return pl.pallas_call(
            kernel,
            out_shape=jax.ShapeDtypeStruct((batch, out_dims[-1]), out_dtype),
            grid=grid,
            in_specs=_build_specs(single_buffer_weights),
            out_specs=out_spec,
            compiler_params=pltpu.CompilerParams(
                dimension_semantics=("parallel",),   # batch tiles are independent
                vmem_limit_bytes=vmem_cap,
            ),
        )(x, *prepped_params)

    if _WEIGHT_SINGLE_BUFFER["ok"]:
        try:
            out_pad = _run(True)
        except Exception:
            _WEIGHT_SINGLE_BUFFER["ok"] = False
            out_pad = _run(False)
    else:
        out_pad = _run(False)

    return out_pad[:, :action_dim]


# ---------------------------------------------------------------------------
# Pure-JAX references
# ---------------------------------------------------------------------------
def _act_fn(activation: str):
    return jnp.tanh if activation == "tanh" else (lambda v: jnp.maximum(v, 0.0))


def mlp_reference_f32(x, params, config: Dict):
    """Full-f32 reference (module semantics)."""
    act = _act_fn(config.get("activation", "tanh").lower())
    n_layers = len(params) // 2
    h = x
    for layer in range(n_layers):
        w, b = params[2 * layer], params[2 * layer + 1]
        h = h @ w + b
        if layer < n_layers - 1:
            h = act(h)
    return h


def mlp_reference_mixed(x, params, config: Dict):
    """Mixed-precision reference matching the kernel's bf16-operand / f32-acc scheme."""
    act = _act_fn(config.get("activation", "tanh").lower())
    n_layers = len(params) // 2
    h = x.astype(jnp.bfloat16)
    for layer in range(n_layers):
        w, b = params[2 * layer], params[2 * layer + 1]
        y = jnp.dot(h, w.astype(jnp.bfloat16), preferred_element_type=jnp.float32) + b
        if layer < n_layers - 1:
            h = act(y).astype(jnp.bfloat16)
        else:
            h = y
    return h


# ---------------------------------------------------------------------------
if __name__ == "__main__":
    config = {
        "obs_dim": 16,
        "action_dim": 8,
        "sizes": [32, 32],
        "activation": "tanh",
    }

    key = jax.random.PRNGKey(0)
    key, kx, kx2 = jax.random.split(key, 3)
    params = make_mlp_params(key, config)
    prepped = prepare_mlp_params(params, config)   # pad + cast ONCE, outside the hot path

    # --- small sanity case (single full-extent block, no padding at all on x) ---
    batch = 4
    x = jax.random.normal(kx, (batch, config["obs_dim"]), jnp.float32)
    out = jax.block_until_ready(mlp_forward(x, prepped, config))
    assert out.shape == (batch, config["action_dim"])
    assert jnp.allclose(out, mlp_reference_mixed(x, params, config), atol=1e-3, rtol=1e-3), \
        "mismatch vs mixed-precision ref"
    assert jnp.allclose(out, mlp_reference_f32(x, params, config), atol=5e-2, rtol=5e-2), \
        "mismatch vs f32 ref"

    # --- tiled case: batch grid with a ragged last block (300 rows, tile_b=128 -> grid=(3,)) ---
    batch2 = 300
    x2 = jax.random.normal(kx2, (batch2, config["obs_dim"]), jnp.float32)
    out2 = jax.block_until_ready(mlp_forward(x2, prepped, config, tile_b=128))
    assert out2.shape == (batch2, config["action_dim"])
    assert jnp.allclose(out2, mlp_reference_mixed(x2, params, config), atol=1e-3, rtol=1e-3)
    assert jnp.allclose(out2, mlp_reference_f32(x2, params, config), atol=5e-2, rtol=5e-2)

    # --- relu activation path ---
    config_r = dict(config, activation="relu")
    out3 = jax.block_until_ready(mlp_forward(x2, prepped, config_r, tile_b=128))
    assert jnp.allclose(out3, mlp_reference_mixed(x2, params, config_r), atol=1e-3, rtol=1e-3)

    print("KERNEL_OK")
</pallas_src>

<mosaic_0001>
module attributes {stable_mosaic.version = 11 : i64} {
  func.func @_mlp_kernel(%arg0: i32, %arg1: memref<4x16xf32, #tpu.memory_space<vmem>>, %arg2: memref<16x128xbf16, #tpu.memory_space<vmem>>, %arg3: memref<1x128xf32, #tpu.memory_space<vmem>>, %arg4: memref<128x128xbf16, #tpu.memory_space<vmem>>, %arg5: memref<1x128xf32, #tpu.memory_space<vmem>>, %arg6: memref<128x128xbf16, #tpu.memory_space<vmem>>, %arg7: memref<1x128xf32, #tpu.memory_space<vmem>>, %arg8: memref<4x128xf32, #tpu.memory_space<vmem>>) attributes {dimension_semantics = [#tpu.dimension_semantics<parallel>], iteration_bounds = array<i64: 1>, scalar_prefetch = 0 : i64, scratch_operands = 0 : i64, tpu.core_type = #tpu.core_type<tc>, window_params = [{transform_indices = @transform_0, window_bounds = array<i64: 4, 16>}, {pipeline_mode = #tpu.pipeline_mode<synchronous>, transform_indices = @transform_1, window_bounds = array<i64: 16, 128>}, {pipeline_mode = #tpu.pipeline_mode<synchronous>, transform_indices = @transform_2, window_bounds = array<i64: 1, 128>}, {pipeline_mode = #tpu.pipeline_mode<synchronous>, transform_indices = @transform_3, window_bounds = array<i64: 128, 128>}, {pipeline_mode = #tpu.pipeline_mode<synchronous>, transform_indices = @transform_4, window_bounds = array<i64: 1, 128>}, {pipeline_mode = #tpu.pipeline_mode<synchronous>, transform_indices = @transform_5, window_bounds = array<i64: 128, 128>}, {pipeline_mode = #tpu.pipeline_mode<synchronous>, transform_indices = @transform_6, window_bounds = array<i64: 1, 128>}, {transform_indices = @transform_7, window_bounds = array<i64: 4, 128>}]} {
    %c0 = arith.constant 0 : index
    %c0_0 = arith.constant 0 : index
    %0 = vector.load %arg1[%c0, %c0_0] : memref<4x16xf32, #tpu.memory_space<vmem>>, vector<4x16xf32>
    %1 = arith.truncf %0 : vector<4x16xf32> to vector<4x16xbf16>
    %c0_1 = arith.constant 0 : index
    %c0_2 = arith.constant 0 : index
    %2 = vector.load %arg2[%c0_1, %c0_2] : memref<16x128xbf16, #tpu.memory_space<vmem>>, vector<16x128xbf16>
    %c0_3 = arith.constant 0 : index
    %c0_4 = arith.constant 0 : index
    %3 = vector.load %arg3[%c0_3, %c0_4] : memref<1x128xf32, #tpu.memory_space<vmem>>, vector<1x128xf32>
    %cst = arith.constant dense<0.000000e+00> : vector<4x128xf32>
    %4 = tpu.matmul %1, %2, %cst {dimension_numbers = #tpu.dot_dimension_numbers<[1], [0], [0], [1], [0, 0, 1, 1], [], []>} : vector<4x16xbf16>, vector<16x128xbf16>, vector<4x128xf32> -> vector<4x128xf32>
    %5 = vector.broadcast %3 : vector<1x128xf32> to vector<4x128xf32>
    %6 = arith.addf %4, %5 : vector<4x128xf32>
    %7 = math.tanh %6 : vector<4x128xf32>
    %8 = arith.truncf %7 : vector<4x128xf32> to vector<4x128xbf16>
    %c0_5 = arith.constant 0 : index
    %c0_6 = arith.constant 0 : index
    %9 = vector.load %arg4[%c0_5, %c0_6] : memref<128x128xbf16, #tpu.memory_space<vmem>>, vector<128x128xbf16>
    %c0_7 = arith.constant 0 : index
    %c0_8 = arith.constant 0 : index
    %10 = vector.load %arg5[%c0_7, %c0_8] : memref<1x128xf32, #tpu.memory_space<vmem>>, vector<1x128xf32>
    %cst_9 = arith.constant dense<0.000000e+00> : vector<4x128xf32>
    %11 = tpu.matmul %8, %9, %cst_9 {dimension_numbers = #tpu.dot_dimension_numbers<[1], [0], [0], [1], [0, 0, 1, 1], [], []>} : vector<4x128xbf16>, vector<128x128xbf16>, vector<4x128xf32> -> vector<4x128xf32>
    %12 = vector.broadcast %10 : vector<1x128xf32> to vector<4x128xf32>
    %13 = arith.addf %11, %12 : vector<4x128xf32>
    %14 = math.tanh %13 : vector<4x128xf32>
    %15 = arith.truncf %14 : vector<4x128xf32> to vector<4x128xbf16>
    %c0_10 = arith.constant 0 : index
    %c0_11 = arith.constant 0 : index
    %16 = vector.load %arg6[%c0_10, %c0_11] : memref<128x128xbf16, #tpu.memory_space<vmem>>, vector<128x128xbf16>
    %c0_12 = arith.constant 0 : index
    %c0_13 = arith.constant 0 : index
    %17 = vector.load %arg7[%c0_12, %c0_13] : memref<1x128xf32, #tpu.memory_space<vmem>>, vector<1x128xf32>
    %cst_14 = arith.constant dense<0.000000e+00> : vector<4x128xf32>
    %18 = tpu.matmul %15, %16, %cst_14 {dimension_numbers = #tpu.dot_dimension_numbers<[1], [0], [0], [1], [0, 0, 1, 1], [], []>} : vector<4x128xbf16>, vector<128x128xbf16>, vector<4x128xf32> -> vector<4x128xf32>
    %19 = vector.broadcast %17 : vector<1x128xf32> to vector<4x128xf32>
    %20 = arith.addf %18, %19 : vector<4x128xf32>
    %c0_15 = arith.constant 0 : index
    %c0_16 = arith.constant 0 : index
    %21 = vector.load %arg8[%c0_15, %c0_16] : memref<4x128xf32, #tpu.memory_space<vmem>>, vector<4x128xf32>
    tpu.vector_store %arg8[%c0_15, %c0_16], %20 {strides = array<i32>} : memref<4x128xf32, #tpu.memory_space<vmem>>, vector<4x128xf32>,
    return
  }
  func.func @transform_0(%arg0: i32) -> (i32, i32) {
    %c0_i32 = arith.constant 0 : i32
    %c0_i32_0 = arith.constant 0 : i32
    return %arg0, %c0_i32 : i32, i32
  }
  func.func @transform_1(%arg0: i32) -> (i32, i32) {
    %c0_i32 = arith.constant 0 : i32
    %c0_i32_0 = arith.constant 0 : i32
    %c0_i32_1 = arith.constant 0 : i32
    return %c0_i32, %c0_i32_0 : i32, i32
  }
  func.func @transform_2(%arg0: i32) -> (i32, i32) {
    %c0_i32 = arith.constant 0 : i32
    %c0_i32_0 = arith.constant 0 : i32
    %c0_i32_1 = arith.constant 0 : i32
    return %c0_i32, %c0_i32_0 : i32, i32
  }
  func.func @transform_3(%arg0: i32) -> (i32, i32) {
    %c0_i32 = arith.constant 0 : i32
    %c0_i32_0 = arith.constant 0 : i32
    %c0_i32_1 = arith.constant 0 : i32
    return %c0_i32, %c0_i32_0 : i32, i32
  }
  func.func @transform_4(%arg0: i32) -> (i32, i32) {
    %c0_i32 = arith.constant 0 : i32
    %c0_i32_0 = arith.constant 0 : i32
    %c0_i32_1 = arith.constant 0 : i32
    return %c0_i32, %c0_i32_0 : i32, i32
  }
  func.func @transform_5(%arg0: i32) -> (i32, i32) {
    %c0_i32 = arith.constant 0 : i32
    %c0_i32_0 = arith.constant 0 : i32
    %c0_i32_1 = arith.constant 0 : i32
    return %c0_i32, %c0_i32_0 : i32, i32
  }
  func.func @transform_6(%arg0: i32) -> (i32, i32) {
    %c0_i32 = arith.constant 0 : i32
    %c0_i32_0 = arith.constant 0 : i32
    %c0_i32_1 = arith.constant 0 : i32
    return %c0_i32, %c0_i32_0 : i32, i32
  }
  func.func @transform_7(%arg0: i32) -> (i32, i32) {
    %c0_i32 = arith.constant 0 : i32
    %c0_i32_0 = arith.constant 0 : i32
    return %arg0, %c0_i32 : i32, i32
  }
}

module attributes {stable_mosaic.version = 11 : i64} {
  func.func @_mlp_kernel(%arg0: i32, %arg1: memref<4x16xf32, #tpu.memory_space<vmem>>, %arg2: memref<16x128xbf16, #tpu.memory_space<vmem>>, %arg3: memref<1x128xf32, #tpu.memory_space<vmem>>, %arg4: memref<128x128xbf16, #tpu.memory_space<vmem>>, %arg5: memref<1x128xf32, #tpu.memory_space<vmem>>, %arg6: memref<128x128xbf16, #tpu.memory_space<vmem>>, %arg7: memref<1x128xf32, #tpu.memory_space<vmem>>, %arg8: memref<4x128xf32, #tpu.memory_space<vmem>>) attributes {dimension_semantics = [#tpu.dimension_semantics<parallel>], iteration_bounds = array<i64: 1>, scalar_prefetch = 0 : i64, scratch_operands = 0 : i64, tpu.core_type = #tpu.core_type<tc>, window_params = [{transform_indices = @transform_0, window_bounds = array<i64: 4, 16>}, {pipeline_mode = #tpu.pipeline_mode<synchronous>, transform_indices = @transform_1, window_bounds = array<i64: 16, 128>}, {pipeline_mode = #tpu.pipeline_mode<synchronous>, transform_indices = @transform_2, window_bounds = array<i64: 1, 128>}, {pipeline_mode = #tpu.pipeline_mode<synchronous>, transform_indices = @transform_3, window_bounds = array<i64: 128, 128>}, {pipeline_mode = #tpu.pipeline_mode<synchronous>, transform_indices = @transform_4, window_bounds = array<i64: 1, 128>}, {pipeline_mode = #tpu.pipeline_mode<synchronous>, transform_indices = @transform_5, window_bounds = array<i64: 128, 128>}, {pipeline_mode = #tpu.pipeline_mode<synchronous>, transform_indices = @transform_6, window_bounds = array<i64: 1, 128>}, {transform_indices = @transform_7, window_bounds = array<i64: 4, 128>}]} {
    %c0 = arith.constant 0 : index
    %c0_0 = arith.constant 0 : index
    %0 = vector.load %arg1[%c0, %c0_0] : memref<4x16xf32, #tpu.memory_space<vmem>>, vector<4x16xf32>
    %1 = arith.truncf %0 : vector<4x16xf32> to vector<4x16xbf16>
    %c0_1 = arith.constant 0 : index
    %c0_2 = arith.constant 0 : index
    %2 = vector.load %arg2[%c0_1, %c0_2] : memref<16x128xbf16, #tpu.memory_space<vmem>>, vector<16x128xbf16>
    %c0_3 = arith.constant 0 : index
    %c0_4 = arith.constant 0 : index
    %3 = vector.load %arg3[%c0_3, %c0_4] : memref<1x128xf32, #tpu.memory_space<vmem>>, vector<1x128xf32>
    %cst = arith.constant dense<0.000000e+00> : vector<4x128xf32>
    %4 = tpu.matmul %1, %2, %cst {dimension_numbers = #tpu.dot_dimension_numbers<[1], [0], [0], [1], [0, 0, 1, 1], [], []>} : vector<4x16xbf16>, vector<16x128xbf16>, vector<4x128xf32> -> vector<4x128xf32>
    %5 = vector.broadcast %3 : vector<1x128xf32> to vector<4x128xf32>
    %6 = arith.addf %4, %5 : vector<4x128xf32>
    %7 = math.tanh %6 : vector<4x128xf32>
    %8 = arith.truncf %7 : vector<4x128xf32> to vector<4x128xbf16>
    %c0_5 = arith.constant 0 : index
    %c0_6 = arith.constant 0 : index
    %9 = vector.load %arg4[%c0_5, %c0_6] : memref<128x128xbf16, #tpu.memory_space<vmem>>, vector<128x128xbf16>
    %c0_7 = arith.constant 0 : index
    %c0_8 = arith.constant 0 : index
    %10 = vector.load %arg5[%c0_7, %c0_8] : memref<1x128xf32, #tpu.memory_space<vmem>>, vector<1x128xf32>
    %cst_9 = arith.constant dense<0.000000e+00> : vector<4x128xf32>
    %11 = tpu.matmul %8, %9, %cst_9 {dimension_numbers = #tpu.dot_dimension_numbers<[1], [0], [0], [1], [0, 0, 1, 1], [], []>} : vector<4x128xbf16>, vector<128x128xbf16>, vector<4x128xf32> -> vector<4x128xf32>
    %12 = vector.broadcast %10 : vector<1x128xf32> to vector<4x128xf32>
    %13 = arith.addf %11, %12 : vector<4x128xf32>
    %14 = math.tanh %13 : vector<4x128xf32>
    %15 = arith.truncf %14 : vector<4x128xf32> to vector<4x128xbf16>
    %c0_10 = arith.constant 0 : index
    %c0_11 = arith.constant 0 : index
    %16 = vector.load %arg6[%c0_10, %c0_11] : memref<128x128xbf16, #tpu.memory_space<vmem>>, vector<128x128xbf16>
    %c0_12 = arith.constant 0 : index
    %c0_13 = arith.constant 0 : index
    %17 = vector.load %arg7[%c0_12, %c0_13] : memref<1x128xf32, #tpu.memory_space<vmem>>, vector<1x128xf32>
    %cst_14 = arith.constant dense<0.000000e+00> : vector<4x128xf32>
    %18 = tpu.matmul %15, %16, %cst_14 {dimension_numbers = #tpu.dot_dimension_numbers<[1], [0], [0], [1], [0, 0, 1, 1], [], []>} : vector<4x128xbf16>, vector<128x128xbf16>, vector<4x128xf32> -> vector<4x128xf32>
    %19 = vector.broadcast %17 : vector<1x128xf32> to vector<4x128xf32>
    %20 = arith.addf %18, %19 : vector<4x128xf32>
    %c0_15 = arith.constant 0 : index
    %c0_16 = arith.constant 0 : index
    %21 = vector.load %arg8[%c0_15, %c0_16] : memref<4x128xf32, #tpu.memory_space<vmem>>, vector<4x128xf32>
    tpu.vector_store %arg8[%c0_15, %c0_16], %20 {strides = array<i32>} : memref<4x128xf32, #tpu.memory_space<vmem>>, vector<4x128xf32>,
    return
  }
  func.func @transform_0(%arg0: i32) -> (i32, i32) {
    %c0_i32 = arith.constant 0 : i32
    %c0_i32_0 = arith.constant 0 : i32
    return %arg0, %c0_i32 : i32, i32
  }
  func.func @transform_1(%arg0: i32) -> (i32, i32) {
    %c0_i32 = arith.constant 0 : i32
    %c0_i32_0 = arith.constant 0 : i32
    %c0_i32_1 = arith.constant 0 : i32
    return %c0_i32, %c0_i32_0 : i32, i32
  }
  func.func @transform_2(%arg0: i32) -> (i32, i32) {
    %c0_i32 = arith.constant 0 : i32
    %c0_i32_0 = arith.constant 0 : i32
    %c0_i32_1 = arith.constant 0 : i32
    return %c0_i32, %c0_i32_0 : i32, i32
  }
  func.func @transform_3(%arg0: i32) -> (i32, i32) {
    %c0_i32 = arith.constant 0 : i32
    %c0_i32_0 = arith.constant 0 : i32
    %c0_i32_1 = arith.constant 0 : i32
    return %c0_i32, %c0_i32_0 : i32, i32
  }
  func.func @transform_4(%arg0: i32) -> (i32, i32) {
    %c0_i32 = arith.constant 0 : i32
    %c0_i32_0 = arith.constant 0 : i32
    %c0_i32_1 = arith.constant 0 : i32
    return %c0_i32, %c0_i32_0 : i32, i32
  }
  func.func @transform_5(%arg0: i32) -> (i32, i32) {
    %c0_i32 = arith.constant 0 : i32
    %c0_i32_0 = arith.constant 0 : i32
    %c0_i32_1 = arith.constant 0 : i32
    return %c0_i32, %c0_i32_0 : i32, i32
  }
  func.func @transform_6(%arg0: i32) -> (i32, i32) {
    %c0_i32 = arith.constant 0 : i32
    %c0_i32_0 = arith.constant 0 : i32
    %c0_i32_1 = arith.constant 0 : i32
    return %c0_i32, %c0_i32_0 : i32, i32
  }
  func.func @transform_7(%arg0: i32) -> (i32, i32) {
    %c0_i32 = arith.constant 0 : i32
    %c0_i32_0 = arith.constant 0 : i32
    return %arg0, %c0_i32 : i32, i32
  }
}

</mosaic_0001>

<llo_original>
// kernel: tpu_custom_call.1
$region0: #{tpu_custom_call.1}
  #allocation0 [shape = 'u32[]', space=smem, size = 0x4, offset = 0x4, fixed_abs, tag = 'smem constant byte address 0x4 - core index']
  #allocation1 [shape = 'u32[144,128]{1,0:T(1,128)}', space=vmem, size = 0x12000, scoped, tag = 'internal scratch']
  %s0 = inlined_call_operand.hbm [shape: f32[4,16], index: 0, kind: input, shape index: {}]
  %s1 = inlined_call_operand.hbm [shape: bf16[16,128], index: 1, kind: input, shape index: {}]
  %s2 = inlined_call_operand.hbm [shape: f32[1,128], index: 2, kind: input, shape index: {}]
  %s3 = inlined_call_operand.hbm [shape: bf16[128,128], index: 3, kind: input, shape index: {}]
  %s4 = inlined_call_operand.hbm [shape: f32[1,128], index: 4, kind: input, shape index: {}]
  %s5 = inlined_call_operand.hbm [shape: bf16[128,128], index: 5, kind: input, shape index: {}]
  %s6 = inlined_call_operand.hbm [shape: f32[1,128], index: 6, kind: input, shape index: {}]
  %s7 = inlined_call_operand.hbm [shape: f32[4,128], index: 7, kind: output, shape index: {}]
  %s8 = sld [smem:[#allocation0]]
  $region66: #{tpu_custom_call.1} parent=0
    _
  %s10 = ssub.s32 1, %s8
  %s11 = scalar_select 0, %s10, %s8
  $region1: #{tpu_custom_call.1} parent=0
    #allocation2 [shape = 'u8[2048]{0}', space=vmem, size = 0x800, scoped, tag = 'input window, operand 0, single buffered']
    #allocation3 [shape = 's32[1]{0}', space=sflag, size = 0x4, scoped, tag = 'scoped memory for tpu_custom_call.1']
    #allocation4 [shape = 's32[1]{0}', space=sflag, size = 0x4, scoped, tag = 'scoped memory for tpu_custom_call.1']
    #allocation5 [shape = 'u8[4096]{0}', space=vmem, size = 0x1000, scoped, tag = 'input window, operand 1, single buffered']
    #allocation6 [shape = 's32[1]{0}', space=sflag, size = 0x4, scoped, tag = 'scoped memory for tpu_custom_call.1']
    #allocation7 [shape = 'u8[512]{0}', space=vmem, size = 0x400, scoped, tag = 'input window, operand 2, single buffered']
    #allocation8 [shape = 'u8[32768]{0}', space=vmem, size = 0x8000, scoped, tag = 'input window, operand 3, single buffered']
    #allocation9 [shape = 's32[1]{0}', space=sflag, size = 0x4, scoped, tag = 'scoped memory for tpu_custom_call.1']
    #allocation10 [shape = 'u8[512]{0}', space=vmem, size = 0x400, scoped, tag = 'input window, operand 4, single buffered']
    #allocation11 [shape = 'u8[32768]{0}', space=vmem, size = 0x8000, scoped, tag = 'input window, operand 5, single buffered']
    #allocation12 [shape = 's32[1]{0}', space=sflag, size = 0x4, scoped, tag = 'scoped memory for tpu_custom_call.1']
    #allocation13 [shape = 'u8[512]{0}', space=vmem, size = 0x400, scoped, tag = 'input window, operand 6, single buffered']
    #allocation14 [shape = 'u8[2048]{0}', space=vmem, size = 0x800, scoped, tag = 'output window, operand 0, single buffered']
    %12 = vsyncpa [#allocation3], 0
    %13 = vsyncpa [#allocation6], 0
    %14 = vsyncpa [#allocation9], 0
    %15 = vsyncpa [#allocation12], 0
    %16 = vsyncpa [#allocation4], 0
    // Predicated region
    $region2: #{tpu_custom_call.1} parent=1 // pred_check
      _
    $region3: #{tpu_custom_call.1} parent=1 // pred_check_branch
      %18 = sbr.rel (0) target = $region5
    $region4: #{tpu_custom_call.1} parent=1 // pred_region
      %s20 = ssub.s32 64, 64
      %21 = vsyncadd [#allocation3], %s20
      %s23 = sshll.u32 [#allocation2], 4
      %s24 = int_to_ptr.vmem [resolvable:$true] %s23
      %26 = dma.hbm_to_vmem [thread:$0]  %s0, 64, %s24, [#allocation3]
    $region5: #{tpu_custom_call.1} parent=1 // pred_fallthru
      _
    // Predicated region
    $region6: #{tpu_custom_call.1} parent=1 // pred_check
      _
    $region7: #{tpu_custom_call.1} parent=1 // pred_check_branch
      %28 = sbr.rel (0) target = $region9
    $region8: #{tpu_custom_call.1} parent=1 // pred_region
      %s30 = ssub.s32 128, 128
      %31 = vsyncadd [#allocation6], %s30
      %s32 = sshll.u32 [#allocation5], 4
      %s33 = int_to_ptr.vmem [resolvable:$true] %s32
      %38 = dma.hbm_to_vmem [thread:$0]  %s1, 128, %s33, [#allocation6], 64, 64, 4
    $region9: #{tpu_custom_call.1} parent=1 // pred_fallthru
      _
    // Predicated region
    $region10: #{tpu_custom_call.1} parent=1 // pred_check
      _
    $region11: #{tpu_custom_call.1} parent=1 // pred_check_branch
      %40 = sbr.rel (0) target = $region13
    $region12: #{tpu_custom_call.1} parent=1 // pred_region
      %s42 = ssub.s32 16, 16
      %43 = vsyncadd [#allocation6], %s42
      %s45 = sshll.u32 [#allocation7], 4
      %s46 = int_to_ptr.vmem [resolvable:$true] %s45
      %48 = dma.hbm_to_vmem [thread:$0]  %s2, 16, %s46, [#allocation6]
    $region13: #{tpu_custom_call.1} parent=1 // pred_fallthru
      _
    // Predicated region
    $region14: #{tpu_custom_call.1} parent=1 // pred_check
      _
    $region15: #{tpu_custom_call.1} parent=1 // pred_check_branch
      %50 = sbr.rel (0) target = $region17
    $region16: #{tpu_custom_call.1} parent=1 // pred_region
      %s52 = ssub.s32 1024, 1024
      %53 = vsyncadd [#allocation9], %s52
      %s54 = sshll.u32 [#allocation8], 4
      %s55 = int_to_ptr.vmem [resolvable:$true] %s54
      %60 = dma.hbm_to_vmem [thread:$0]  %s3, 1024, %s55, [#allocation9], 64, 64, 4
    $region17: #{tpu_custom_call.1} parent=1 // pred_fallthru
      _
    // Predicated region
    $region18: #{tpu_custom_call.1} parent=1 // pred_check
      _
    $region19: #{tpu_custom_call.1} parent=1 // pred_check_branch
      %62 = sbr.rel (0) target = $region21
    $region20: #{tpu_custom_call.1} parent=1 // pred_region
      %s64 = ssub.s32 16, 16
      %65 = vsyncadd [#allocation9], %s64
      %s67 = sshll.u32 [#allocation10], 4
      %s68 = int_to_ptr.vmem [resolvable:$true] %s67
      %70 = dma.hbm_to_vmem [thread:$0]  %s4, 16, %s68, [#allocation9]
    $region21: #{tpu_custom_call.1} parent=1 // pred_fallthru
      _
    // Predicated region
    $region22: #{tpu_custom_call.1} parent=1 // pred_check
      _
    $region23: #{tpu_custom_call.1} parent=1 // pred_check_branch
      %72 = sbr.rel (0) target = $region25
    $region24: #{tpu_custom_call.1} parent=1 // pred_region
      %s74 = ssub.s32 1024, 1024
      %75 = vsyncadd [#allocation12], %s74
      %s76 = sshll.u32 [#allocation11], 4
      %s77 = int_to_ptr.vmem [resolvable:$true] %s76
      %82 = dma.hbm_to_vmem [thread:$0]  %s5, 1024, %s77, [#allocation12], 64, 64, 4
    $region25: #{tpu_custom_call.1} parent=1 // pred_fallthru
      _
    // Predicated region
    $region26: #{tpu_custom_call.1} parent=1 // pred_check
      _
    $region27: #{tpu_custom_call.1} parent=1 // pred_check_branch
      %84 = sbr.rel (0) target = $region29
    $region28: #{tpu_custom_call.1} parent=1 // pred_region
      %s86 = ssub.s32 16, 16
      %87 = vsyncadd [#allocation12], %s86
      %s89 = sshll.u32 [#allocation13], 4
      %s90 = int_to_ptr.vmem [resolvable:$true] %s89
      %92 = dma.hbm_to_vmem [thread:$0]  %s6, 16, %s90, [#allocation12]
    $region29: #{tpu_custom_call.1} parent=1 // pred_fallthru
      _
    // Predicated region
    $region30: #{tpu_custom_call.1} parent=1 // pred_check
      _
    $region31: #{tpu_custom_call.1} parent=1 // pred_check_branch
      %94 = sbr.rel (0) target = $region33
    $region32: #{tpu_custom_call.1} parent=1 // pred_region
      %95 = dma.done [#allocation3], 64
    $region33: #{tpu_custom_call.1} parent=1 // pred_fallthru
      _
    // Predicated region
    $region34: #{tpu_custom_call.1} parent=1 // pred_check
      _
    $region35: #{tpu_custom_call.1} parent=1 // pred_check_branch
      %97 = sbr.rel (0) target = $region37
    $region36: #{tpu_custom_call.1} parent=1 // pred_region
      %98 = dma.done [#allocation6], 128
    $region37: #{tpu_custom_call.1} parent=1 // pred_fallthru
      _
    // Predicated region
    $region38: #{tpu_custom_call.1} parent=1 // pred_check
      _
    $region39: #{tpu_custom_call.1} parent=1 // pred_check_branch
      %100 = sbr.rel (0) target = $region41
    $region40: #{tpu_custom_call.1} parent=1 // pred_region
      %101 = dma.done [#allocation6], 16
    $region41: #{tpu_custom_call.1} parent=1 // pred_fallthru
      _
    // Predicated region
    $region42: #{tpu_custom_call.1} parent=1 // pred_check
      _
    $region43: #{tpu_custom_call.1} parent=1 // pred_check_branch
      %103 = sbr.rel (0) target = $region45
    $region44: #{tpu_custom_call.1} parent=1 // pred_region
      %104 = dma.done [#allocation9], 1024
    $region45: #{tpu_custom_call.1} parent=1 // pred_fallthru
      _
    // Predicated region
    $region46: #{tpu_custom_call.1} parent=1 // pred_check
      _
    $region47: #{tpu_custom_call.1} parent=1 // pred_check_branch
      %106 = sbr.rel (0) target = $region49
    $region48: #{tpu_custom_call.1} parent=1 // pred_region
      %107 = dma.done [#allocation9], 16
    $region49: #{tpu_custom_call.1} parent=1 // pred_fallthru
      _
    // Predicated region
    $region50: #{tpu_custom_call.1} parent=1 // pred_check
      _
    $region51: #{tpu_custom_call.1} parent=1 // pred_check_branch
      %109 = sbr.rel (0) target = $region53
    $region52: #{tpu_custom_call.1} parent=1 // pred_region
      %110 = dma.done [#allocation12], 1024
    $region53: #{tpu_custom_call.1} parent=1 // pred_fallthru
      _
    // Predicated region
    $region54: #{tpu_custom_call.1} parent=1 // pred_check
      _
    $region55: #{tpu_custom_call.1} parent=1 // pred_check_branch
      %112 = sbr.rel (0) target = $region57
    $region56: #{tpu_custom_call.1} parent=1 // pred_region
      %113 = dma.done [#allocation12], 16
    $region57: #{tpu_custom_call.1} parent=1 // pred_fallthru
      _
    %v115 = vld [vmem:[#allocation2] sm:$0xf]
    %v116 = vpack.c.bf16 %v115, %v115
    %v117 = vld [vmem:[#allocation5] sm:$0xf]
    %v118 = vld [vmem:[#allocation5 + $0x4] sm:$0xf]
    %v119 = vld [vmem:[#allocation7] sm:$0x1]
    %v121 = vlaneseq
    %v122 = vshrl.u32 %v121, 7
    %v123 = vsub.s32 0, %v122
    %v124 = vrot.slane %v119, %v123
    %v128 = vunpack.c.l.b16 %v117
    %v129 = vunpack.c.l.b16 %v118
    %v130 = vpack.c.b16 %v129, %v128
    %vm132 = vcmask 130048
    %v134 = vsel %vm132, %v116, 0
    %136 = vmatprep.subr.bf16.mxu0 0
    %137 = vmatpush1.bf16.msra.mxu0 %v130
    %138 = vmatprep.subr.bf16.mxu0 0
    %139 = vmatpush1.bf16.msra.mxu0 0
    %140 = vmatprep.subr.bf16.mxu0 0
    %141 = vmatpush1.bf16.msra.mxu0 0
    %142 = vmatprep.subr.bf16.mxu0 0
    %143 = vmatpush1.bf16.msra.mxu0 0
    %144 = vmatprep.subr.bf16.mxu0 0
    %145 = vmatpush1.bf16.msra.mxu0 0
    %146 = vmatprep.subr.bf16.mxu0 0
    %147 = vmatpush1.bf16.msra.mxu0 0
    %148 = vmatprep.subr.bf16.mxu0 0
    %149 = vmatpush1.bf16.msra.mxu0 0
    %150 = vmatprep.subr.bf16.mxu0 0
    %151 = vmatpush1.bf16.msra.mxu0 0
    %152 = vmatprep.subr.bf16.mxu0 0
    %153 = vmatpush1.bf16.msra.mxu0 0
    %154 = vmatprep.subr.bf16.mxu0 0
    %155 = vmatpush1.bf16.msra.mxu0 0
    %156 = vmatprep.subr.bf16.mxu0 0
    %157 = vmatpush1.bf16.msra.mxu0 0
    %158 = vmatprep.subr.bf16.mxu0 0
    %159 = vmatpush1.bf16.msra.mxu0 0
    %160 = vmatprep.subr.bf16.mxu0 0
    %161 = vmatpush1.bf16.msra.mxu0 0
    %162 = vmatprep.subr.bf16.mxu0 0
    %163 = vmatpush1.bf16.msra.mxu0 0
    %164 = vmatprep.subr.bf16.mxu0 0
    %165 = vmatpush1.bf16.msra.mxu0 0
    %166 = vmatprep.subr.bf16.mxu0 0
    %167 = vmatpush1.bf16.msra.mxu0 0
    %168 = vmatprep.mubr.bf16.mxu0 0
    %169 = vmatmul.mubr.bf16.gmra.mrb[0].mxu0 %v134
    %v170 = vpop.f32.mrb[0].mxu0
    %v171 = vadd.f32 %v124, %v170
    %v172 = vpop.f32.mrb[0].mxu0
    %v173 = vpop.f32.mrb[0].mxu0
    %v174 = vpop.f32.mrb[0].mxu0
    %175 = vdwg.mxu0
    %v176 = vtanh.pop %v171
    %v177 = vpack.c.bf16 %v176, %v176
    %v178 = vld [vmem:[#allocation8] sm:$0xf]
    %v179 = vld [vmem:[#allocation8 + $0x4] sm:$0xf]
    %v180 = vld [vmem:[#allocation8 + $0x8] sm:$0xf]
    %v181 = vld [vmem:[#allocation8 + $0xc] sm:$0xf]
    %v182 = vld [vmem:[#allocation8 + $0x10] sm:$0xf]
    %v183 = vld [vmem:[#allocation8 + $0x14] sm:$0xf]
    %v184 = vld [vmem:[#allocation8 + $0x18] sm:$0xf]
    %v185 = vld [vmem:[#allocation8 + $0x1c] sm:$0xf]
    %v186 = vld [vmem:[#allocation8 + $0x20] sm:$0xf]
    %v187 = vld [vmem:[#allocation8 + $0x24] sm:$0xf]
    %v188 = vld [vmem:[#allocation8 + $0x28] sm:$0xf]
    %v189 = vld [vmem:[#allocation8 + $0x2c] sm:$0xf]
    %v190 = vld [vmem:[#allocation8 + $0x30] sm:$0xf]
    %v191 = vld [vmem:[#allocation8 + $0x34] sm:$0xf]
    %v192 = vld [vmem:[#allocation8 + $0x38] sm:$0xf]
    %v193 = vld [vmem:[#allocation8 + $0x3c] sm:$0xf]
    %v194 = vld [vmem:[#allocation10] sm:$0x1]
    %v196 = vlaneseq
    %v197 = vshrl.u32 %v196, 7
    %v198 = vsub.s32 0, %v197
    %v199 = vrot.slane %v194, %v198
    %v217 = vunpack.c.l.b16 %v178
    %v218 = vunpack.c.l.b16 %v179
    %v219 = vunpack.c.l.b16 %v180
    %v220 = vunpack.c.l.b16 %v181
    %v221 = vunpack.c.l.b16 %v182
    %v222 = vunpack.c.l.b16 %v183
    %v223 = vunpack.c.l.b16 %v184
    %v224 = vunpack.c.l.b16 %v185
    %v225 = vunpack.c.l.b16 %v186
    %v226 = vunpack.c.l.b16 %v187
    %v227 = vunpack.c.l.b16 %v188
    %v228 = vunpack.c.l.b16 %v189
    %v229 = vunpack.c.l.b16 %v190
    %v230 = vunpack.c.l.b16 %v191
    %v231 = vunpack.c.l.b16 %v192
    %v232 = vunpack.c.l.b16 %v193
    %v233 = vpack.c.b16 %v218, %v217
    %v234 = vpack.c.b16 %v220, %v219
    %v235 = vpack.c.b16 %v222, %v221
    %v236 = vpack.c.b16 %v224, %v223
    %v237 = vpack.c.b16 %v226, %v225
    %v238 = vpack.c.b16 %v228, %v227
    %v239 = vpack.c.b16 %v230, %v229
    %v240 = vpack.c.b16 %v232, %v231
    %249 = vmatprep.subr.bf16.mxu0 0
    %250 = vmatpush1.bf16.msra.mxu0 %v233
    %251 = vmatprep.subr.bf16.mxu0 0
    %252 = vmatpush1.bf16.msra.mxu0 %v234
    %253 = vmatprep.subr.bf16.mxu0 0
    %254 = vmatpush1.bf16.msra.mxu0 %v235
    %255 = vmatprep.subr.bf16.mxu0 0
    %256 = vmatpush1.bf16.msra.mxu0 %v236
    %257 = vmatprep.subr.bf16.mxu0 0
    %258 = vmatpush1.bf16.msra.mxu0 %v237
    %259 = vmatprep.subr.bf16.mxu0 0
    %260 = vmatpush1.bf16.msra.mxu0 %v238
    %261 = vmatprep.subr.bf16.mxu0 0
    %262 = vmatpush1.bf16.msra.mxu0 %v239
    %263 = vmatprep.subr.bf16.mxu0 0
    %264 = vmatpush1.bf16.msra.mxu0 %v240
    %265 = vmatprep.subr.bf16.mxu0 0
    %266 = vmatpush1.bf16.msra.mxu0 0
    %267 = vmatprep.subr.bf16.mxu0 0
    %268 = vmatpush1.bf16.msra.mxu0 0
    %269 = vmatprep.subr.bf16.mxu0 0
    %270 = vmatpush1.bf16.msra.mxu0 0
    %271 = vmatprep.subr.bf16.mxu0 0
    %272 = vmatpush1.bf16.msra.mxu0 0
    %273 = vmatprep.subr.bf16.mxu0 0
    %274 = vmatpush1.bf16.msra.mxu0 0
    %275 = vmatprep.subr.bf16.mxu0 0
    %276 = vmatpush1.bf16.msra.mxu0 0
    %277 = vmatprep.subr.bf16.mxu0 0
    %278 = vmatpush1.bf16.msra.mxu0 0
    %279 = vmatprep.subr.bf16.mxu0 0
    %280 = vmatpush1.bf16.msra.mxu0 0
    %281 = vmatprep.mubr.bf16.mxu0 0
    %282 = vmatmul.mubr.bf16.gmra.mrb[0].mxu0 %v177
    %v283 = vpop.f32.mrb[0].mxu0
    %v284 = vadd.f32 %v199, %v283
    %v285 = vpop.f32.mrb[0].mxu0
    %v286 = vpop.f32.mrb[0].mxu0
    %v287 = vpop.f32.mrb[0].mxu0
    %288 = vdwg.mxu0
    %v289 = vtanh.pop %v284
    %v290 = vpack.c.bf16 %v289, %v289
    %v291 = vld [vmem:[#allocation11] sm:$0xf]
    %v292 = vld [vmem:[#allocation11 + $0x4] sm:$0xf]
    %v293 = vld [vmem:[#allocation11 + $0x8] sm:$0xf]
    %v294 = vld [vmem:[#allocation11 + $0xc] sm:$0xf]
    %v295 = vld [vmem:[#allocation11 + $0x10] sm:$0xf]
    %v296 = vld [vmem:[#allocation11 + $0x14] sm:$0xf]
    %v297 = vld [vmem:[#allocation11 + $0x18] sm:$0xf]
    %v298 = vld [vmem:[#allocation11 + $0x1c] sm:$0xf]
    %v299 = vld [vmem:[#allocation11 + $0x20] sm:$0xf]
    %v300 = vld [vmem:[#allocation11 + $0x24] sm:$0xf]
    %v301 = vld [vmem:[#allocation11 + $0x28] sm:$0xf]
    %v302 = vld [vmem:[#allocation11 + $0x2c] sm:$0xf]
    %v303 = vld [vmem:[#allocation11 + $0x30] sm:$0xf]
    %v304 = vld [vmem:[#allocation11 + $0x34] sm:$0xf]
    %v305 = vld [vmem:[#allocation11 + $0x38] sm:$0xf]
    %v306 = vld [vmem:[#allocation11 + $0x3c] sm:$0xf]
    %v307 = vld [vmem:[#allocation13] sm:$0x1]
    %v309 = vlaneseq
    %v310 = vshrl.u32 %v309, 7
    %v311 = vsub.s32 0, %v310
    %v312 = vrot.slane %v307, %v311
    %v330 = vunpack.c.l.b16 %v291
    %v331 = vunpack.c.l.b16 %v292
    %v332 = vunpack.c.l.b16 %v293
    %v333 = vunpack.c.l.b16 %v294
    %v334 = vunpack.c.l.b16 %v295
    %v335 = vunpack.c.l.b16 %v296
    %v336 = vunpack.c.l.b16 %v297
    %v337 = vunpack.c.l.b16 %v298
    %v338 = vunpack.c.l.b16 %v299
    %v339 = vunpack.c.l.b16 %v300
    %v340 = vunpack.c.l.b16 %v301
    %v341 = vunpack.c.l.b16 %v302
    %v342 = vunpack.c.l.b16 %v303
    %v343 = vunpack.c.l.b16 %v304
    %v344 = vunpack.c.l.b16 %v305
    %v345 = vunpack.c.l.b16 %v306
    %v346 = vpack.c.b16 %v331, %v330
    %v347 = vpack.c.b16 %v333, %v332
    %v348 = vpack.c.b16 %v335, %v334
    %v349 = vpack.c.b16 %v337, %v336
    %v350 = vpack.c.b16 %v339, %v338
    %v351 = vpack.c.b16 %v341, %v340
    %v352 = vpack.c.b16 %v343, %v342
    %v353 = vpack.c.b16 %v345, %v344
    %362 = vmatprep.subr.bf16.mxu0 0
    %363 = vmatpush1.bf16.msra.mxu0 %v346
    %364 = vmatprep.subr.bf16.mxu0 0
    %365 = vmatpush1.bf16.msra.mxu0 %v347
    %366 = vmatprep.subr.bf16.mxu0 0
    %367 = vmatpush1.bf16.msra.mxu0 %v348
    %368 = vmatprep.subr.bf16.mxu0 0
    %369 = vmatpush1.bf16.msra.mxu0 %v349
    %370 = vmatprep.subr.bf16.mxu0 0
    %371 = vmatpush1.bf16.msra.mxu0 %v350
    %372 = vmatprep.subr.bf16.mxu0 0
    %373 = vmatpush1.bf16.msra.mxu0 %v351
    %374 = vmatprep.subr.bf16.mxu0 0
    %375 = vmatpush1.bf16.msra.mxu0 %v352
    %376 = vmatprep.subr.bf16.mxu0 0
    %377 = vmatpush1.bf16.msra.mxu0 %v353
    %378 = vmatprep.subr.bf16.mxu0 0
    %379 = vmatpush1.bf16.msra.mxu0 0
    %380 = vmatprep.subr.bf16.mxu0 0
    %381 = vmatpush1.bf16.msra.mxu0 0
    %382 = vmatprep.subr.bf16.mxu0 0
    %383 = vmatpush1.bf16.msra.mxu0 0
    %384 = vmatprep.subr.bf16.mxu0 0
    %385 = vmatpush1.bf16.msra.mxu0 0
    %386 = vmatprep.subr.bf16.mxu0 0
    %387 = vmatpush1.bf16.msra.mxu0 0
    %388 = vmatprep.subr.bf16.mxu0 0
    %389 = vmatpush1.bf16.msra.mxu0 0
    %390 = vmatprep.subr.bf16.mxu0 0
    %391 = vmatpush1.bf16.msra.mxu0 0
    %392 = vmatprep.subr.bf16.mxu0 0
    %393 = vmatpush1.bf16.msra.mxu0 0
    %394 = vmatprep.mubr.bf16.mxu0 0
    %395 = vmatmul.mubr.bf16.gmra.mrb[0].mxu0 %v290
    %v396 = vpop.f32.mrb[0].mxu0
    %v397 = vadd.f32 %v312, %v396
    %v398 = vpop.f32.mrb[0].mxu0
    %v399 = vpop.f32.mrb[0].mxu0
    %v400 = vpop.f32.mrb[0].mxu0
    %401 = vdwg.mxu0
    %402 = vst [vmem:[#allocation14] sm:$0xf] %v397
    // Predicated region
    $region58: #{tpu_custom_call.1} parent=1 // pred_check
      _
    $region59: #{tpu_custom_call.1} parent=1 // pred_check_branch
      %404 = sbr.rel (0) target = $region61
    $region60: #{tpu_custom_call.1} parent=1 // pred_region
      %s406 = ssub.s32 64, 64
      %407 = vsyncadd [#allocation4], %s406
      %s409 = sshll.u32 [#allocation14], 4
      %s410 = int_to_ptr.vmem [resolvable:$true] %s409
      %412 = dma.vmem_to_hbm [thread:$0]  %s410, 64, %s7, [#allocation4]
    $region61: #{tpu_custom_call.1} parent=1 // pred_fallthru
      _
    // Predicated region
    $region62: #{tpu_custom_call.1} parent=1 // pred_check
      _
    $region63: #{tpu_custom_call.1} parent=1 // pred_check_branch
      %414 = sbr.rel (0) target = $region65
    $region64: #{tpu_custom_call.1} parent=1 // pred_region
      %415 = dma.done [#allocation4], 64
    $region65: #{tpu_custom_call.1} parent=1 // pred_fallthru
      _
    %416 = vsyncpa [#allocation3], 1
    %417 = vsyncpa [#allocation6], 1
    %418 = vsyncpa [#allocation9], 1
    %419 = vsyncpa [#allocation12], 1
    %420 = vsyncpa [#allocation4], 1

// kernel: tpu_custom_call.1
$region0: #{tpu_custom_call.1}
  #allocation0 [shape = 'u32[]', space=smem, size = 0x4, offset = 0x4, fixed_abs, tag = 'smem constant byte address 0x4 - core index']
  #allocation1 [shape = 'u32[144,128]{1,0:T(1,128)}', space=vmem, size = 0x12000, scoped, tag = 'internal scratch']
  %s0 = inlined_call_operand.hbm [shape: f32[4,16], index: 0, kind: input, shape index: {}]
  %s1 = inlined_call_operand.hbm [shape: bf16[16,128], index: 1, kind: input, shape index: {}]
  %s2 = inlined_call_operand.hbm [shape: f32[1,128], index: 2, kind: input, shape index: {}]
  %s3 = inlined_call_operand.hbm [shape: bf16[128,128], index: 3, kind: input, shape index: {}]
  %s4 = inlined_call_operand.hbm [shape: f32[1,128], index: 4, kind: input, shape index: {}]
  %s5 = inlined_call_operand.hbm [shape: bf16[128,128], index: 5, kind: input, shape index: {}]
  %s6 = inlined_call_operand.hbm [shape: f32[1,128], index: 6, kind: input, shape index: {}]
  %s7 = inlined_call_operand.hbm [shape: f32[4,128], index: 7, kind: output, shape index: {}]
  %s8 = sld [smem:[#allocation0]]
  $region66: #{tpu_custom_call.1} parent=0
    _
  %s10 = ssub.s32 1, %s8
  %s11 = scalar_select 0, %s10, %s8
  $region1: #{tpu_custom_call.1} parent=0
    #allocation2 [shape = 'u8[2048]{0}', space=vmem, size = 0x800, scoped, tag = 'input window, operand 0, single buffered']
    #allocation3 [shape = 's32[1]{0}', space=sflag, size = 0x4, scoped, tag = 'scoped memory for tpu_custom_call.1']
    #allocation4 [shape = 's32[1]{0}', space=sflag, size = 0x4, scoped, tag = 'scoped memory for tpu_custom_call.1']
    #allocation5 [shape = 'u8[4096]{0}', space=vmem, size = 0x1000, scoped, tag = 'input window, operand 1, single buffered']
    #allocation6 [shape = 's32[1]{0}', space=sflag, size = 0x4, scoped, tag = 'scoped memory for tpu_custom_call.1']
    #allocation7 [shape = 'u8[512]{0}', space=vmem, size = 0x400, scoped, tag = 'input window, operand 2, single buffered']
    #allocation8 [shape = 'u8[32768]{0}', space=vmem, size = 0x8000, scoped, tag = 'input window, operand 3, single buffered']
    #allocation9 [shape = 's32[1]{0}', space=sflag, size = 0x4, scoped, tag = 'scoped memory for tpu_custom_call.1']
    #allocation10 [shape = 'u8[512]{0}', space=vmem, size = 0x400, scoped, tag = 'input window, operand 4, single buffered']
    #allocation11 [shape = 'u8[32768]{0}', space=vmem, size = 0x8000, scoped, tag = 'input window, operand 5, single buffered']
    #allocation12 [shape = 's32[1]{0}', space=sflag, size = 0x4, scoped, tag = 'scoped memory for tpu_custom_call.1']
    #allocation13 [shape = 'u8[512]{0}', space=vmem, size = 0x400, scoped, tag = 'input window, operand 6, single buffered']
    #allocation14 [shape = 'u8[2048]{0}', space=vmem, size = 0x800, scoped, tag = 'output window, operand 0, single buffered']
    %12 = vsyncpa [#allocation3], 0
    %13 = vsyncpa [#allocation6], 0
    %14 = vsyncpa [#allocation9], 0
    %15 = vsyncpa [#allocation12], 0
    %16 = vsyncpa [#allocation4], 0
    // Predicated region
    $region2: #{tpu_custom_call.1} parent=1 // pred_check
      _
    $region3: #{tpu_custom_call.1} parent=1 // pred_check_branch
      %18 = sbr.rel (0) target = $region5
    $region4: #{tpu_custom_call.1} parent=1 // pred_region
      %s20 = ssub.s32 64, 64
      %21 = vsyncadd [#allocation3], %s20
      %s23 = sshll.u32 [#allocation2], 4
      %s24 = int_to_ptr.vmem [resolvable:$true] %s23
      %26 = dma.hbm_to_vmem [thread:$0]  %s0, 64, %s24, [#allocation3]
    $region5: #{tpu_custom_call.1} parent=1 // pred_fallthru
      _
    // Predicated region
    $region6: #{tpu_custom_call.1} parent=1 // pred_check
      _
    $region7: #{tpu_custom_call.1} parent=1 // pred_check_branch
      %28 = sbr.rel (0) target = $region9
    $region8: #{tpu_custom_call.1} parent=1 // pred_region
      %s30 = ssub.s32 128, 128
      %31 = vsyncadd [#allocation6], %s30
      %s32 = sshll.u32 [#allocation5], 4
      %s33 = int_to_ptr.vmem [resolvable:$true] %s32
      %38 = dma.hbm_to_vmem [thread:$0]  %s1, 128, %s33, [#allocation6], 64, 64, 4
    $region9: #{tpu_custom_call.1} parent=1 // pred_fallthru
      _
    // Predicated region
    $region10: #{tpu_custom_call.1} parent=1 // pred_check
      _
    $region11: #{tpu_custom_call.1} parent=1 // pred_check_branch
      %40 = sbr.rel (0) target = $region13
    $region12: #{tpu_custom_call.1} parent=1 // pred_region
      %s42 = ssub.s32 16, 16
      %43 = vsyncadd [#allocation6], %s42
      %s45 = sshll.u32 [#allocation7], 4
      %s46 = int_to_ptr.vmem [resolvable:$true] %s45
      %48 = dma.hbm_to_vmem [thread:$0]  %s2, 16, %s46, [#allocation6]
    $region13: #{tpu_custom_call.1} parent=1 // pred_fallthru
      _
    // Predicated region
    $region14: #{tpu_custom_call.1} parent=1 // pred_check
      _
    $region15: #{tpu_custom_call.1} parent=1 // pred_check_branch
      %50 = sbr.rel (0) target = $region17
    $region16: #{tpu_custom_call.1} parent=1 // pred_region
      %s52 = ssub.s32 1024, 1024
      %53 = vsyncadd [#allocation9], %s52
      %s54 = sshll.u32 [#allocation8], 4
      %s55 = int_to_ptr.vmem [resolvable:$true] %s54
      %60 = dma.hbm_to_vmem [thread:$0]  %s3, 1024, %s55, [#allocation9], 64, 64, 4
    $region17: #{tpu_custom_call.1} parent=1 // pred_fallthru
      _
    // Predicated region
    $region18: #{tpu_custom_call.1} parent=1 // pred_check
      _
    $region19: #{tpu_custom_call.1} parent=1 // pred_check_branch
      %62 = sbr.rel (0) target = $region21
    $region20: #{tpu_custom_call.1} parent=1 // pred_region
      %s64 = ssub.s32 16, 16
      %65 = vsyncadd [#allocation9], %s64
      %s67 = sshll.u32 [#allocation10], 4
      %s68 = int_to_ptr.vmem [resolvable:$true] %s67
      %70 = dma.hbm_to_vmem [thread:$0]  %s4, 16, %s68, [#allocation9]
    $region21: #{tpu_custom_call.1} parent=1 // pred_fallthru
      _
    // Predicated region
    $region22: #{tpu_custom_call.1} parent=1 // pred_check
      _
    $region23: #{tpu_custom_call.1} parent=1 // pred_check_branch
      %72 = sbr.rel (0) target = $region25
    $region24: #{tpu_custom_call.1} parent=1 // pred_region
      %s74 = ssub.s32 1024, 1024
      %75 = vsyncadd [#allocation12], %s74
      %s76 = sshll.u32 [#allocation11], 4
      %s77 = int_to_ptr.vmem [resolvable:$true] %s76
      %82 = dma.hbm_to_vmem [thread:$0]  %s5, 1024, %s77, [#allocation12], 64, 64, 4
    $region25: #{tpu_custom_call.1} parent=1 // pred_fallthru
      _
    // Predicated region
    $region26: #{tpu_custom_call.1} parent=1 // pred_check
      _
    $region27: #{tpu_custom_call.1} parent=1 // pred_check_branch
      %84 = sbr.rel (0) target = $region29
    $region28: #{tpu_custom_call.1} parent=1 // pred_region
      %s86 = ssub.s32 16, 16
      %87 = vsyncadd [#allocation12], %s86
      %s89 = sshll.u32 [#allocation13], 4
      %s90 = int_to_ptr.vmem [resolvable:$true] %s89
      %92 = dma.hbm_to_vmem [thread:$0]  %s6, 16, %s90, [#allocation12]
    $region29: #{tpu_custom_call.1} parent=1 // pred_fallthru
      _
    // Predicated region
    $region30: #{tpu_custom_call.1} parent=1 // pred_check
      _
    $region31: #{tpu_custom_call.1} parent=1 // pred_check_branch
      %94 = sbr.rel (0) target = $region33
    $region32: #{tpu_custom_call.1} parent=1 // pred_region
      %95 = dma.done [#allocation3], 64
    $region33: #{tpu_custom_call.1} parent=1 // pred_fallthru
      _
    // Predicated region
    $region34: #{tpu_custom_call.1} parent=1 // pred_check
      _
    $region35: #{tpu_custom_call.1} parent=1 // pred_check_branch
      %97 = sbr.rel (0) target = $region37
    $region36: #{tpu_custom_call.1} parent=1 // pred_region
      %98 = dma.done [#allocation6], 128
    $region37: #{tpu_custom_call.1} parent=1 // pred_fallthru
      _
    // Predicated region
    $region38: #{tpu_custom_call.1} parent=1 // pred_check
      _
    $region39: #{tpu_custom_call.1} parent=1 // pred_check_branch
      %100 = sbr.rel (0) target = $region41
    $region40: #{tpu_custom_call.1} parent=1 // pred_region
      %101 = dma.done [#allocation6], 16
    $region41: #{tpu_custom_call.1} parent=1 // pred_fallthru
      _
    // Predicated region
    $region42: #{tpu_custom_call.1} parent=1 // pred_check
      _
    $region43: #{tpu_custom_call.1} parent=1 // pred_check_branch
      %103 = sbr.rel (0) target = $region45
    $region44: #{tpu_custom_call.1} parent=1 // pred_region
      %104 = dma.done [#allocation9], 1024
    $region45: #{tpu_custom_call.1} parent=1 // pred_fallthru
      _
    // Predicated region
    $region46: #{tpu_custom_call.1} parent=1 // pred_check
      _
    $region47: #{tpu_custom_call.1} parent=1 // pred_check_branch
      %106 = sbr.rel (0) target = $region49
    $region48: #{tpu_custom_call.1} parent=1 // pred_region
      %107 = dma.done [#allocation9], 16
    $region49: #{tpu_custom_call.1} parent=1 // pred_fallthru
      _
    // Predicated region
    $region50: #{tpu_custom_call.1} parent=1 // pred_check
      _
    $region51: #{tpu_custom_call.1} parent=1 // pred_check_branch
      %109 = sbr.rel (0) target = $region53
    $region52: #{tpu_custom_call.1} parent=1 // pred_region
      %110 = dma.done [#allocation12], 1024
    $region53: #{tpu_custom_call.1} parent=1 // pred_fallthru
      _
    // Predicated region
    $region54: #{tpu_custom_call.1} parent=1 // pred_check
      _
    $region55: #{tpu_custom_call.1} parent=1 // pred_check_branch
      %112 = sbr.rel (0) target = $region57
    $region56: #{tpu_custom_call.1} parent=1 // pred_region
      %113 = dma.done [#allocation12], 16
    $region57: #{tpu_custom_call.1} parent=1 // pred_fallthru
      _
    %v115 = vld [vmem:[#allocation2] sm:$0xf]
    %v116 = vpack.c.bf16 %v115, %v115
    %v117 = vld [vmem:[#allocation5] sm:$0xf]
    %v118 = vld [vmem:[#allocation5 + $0x4] sm:$0xf]
    %v119 = vld [vmem:[#allocation7] sm:$0x1]
    %v121 = vlaneseq
    %v122 = vshrl.u32 %v121, 7
    %v123 = vsub.s32 0, %v122
    %v124 = vrot.slane %v119, %v123
    %v128 = vunpack.c.l.b16 %v117
    %v129 = vunpack.c.l.b16 %v118
    %v130 = vpack.c.b16 %v129, %v128
    %vm132 = vcmask 130048
    %v134 = vsel %vm132, %v116, 0
    %136 = vmatprep.subr.bf16.mxu0 0
    %137 = vmatpush1.bf16.msra.mxu0 %v130
    %138 = vmatprep.subr.bf16.mxu0 0
    %139 = vmatpush1.bf16.msra.mxu0 0
    %140 = vmatprep.subr.bf16.mxu0 0
    %141 = vmatpush1.bf16.msra.mxu0 0
    %142 = vmatprep.subr.bf16.mxu0 0
    %143 = vmatpush1.bf16.msra.mxu0 0
    %144 = vmatprep.subr.bf16.mxu0 0
    %145 = vmatpush1.bf16.msra.mxu0 0
    %146 = vmatprep.subr.bf16.mxu0 0
    %147 = vmatpush1.bf16.msra.mxu0 0
    %148 = vmatprep.subr.bf16.mxu0 0
    %149 = vmatpush1.bf16.msra.mxu0 0
    %150 = vmatprep.subr.bf16.mxu0 0
    %151 = vmatpush1.bf16.msra.mxu0 0
    %152 = vmatprep.subr.bf16.mxu0 0
    %153 = vmatpush1.bf16.msra.mxu0 0
    %154 = vmatprep.subr.bf16.mxu0 0
    %155 = vmatpush1.bf16.msra.mxu0 0
    %156 = vmatprep.subr.bf16.mxu0 0
    %157 = vmatpush1.bf16.msra.mxu0 0
    %158 = vmatprep.subr.bf16.mxu0 0
    %159 = vmatpush1.bf16.msra.mxu0 0
    %160 = vmatprep.subr.bf16.mxu0 0
    %161 = vmatpush1.bf16.msra.mxu0 0
    %162 = vmatprep.subr.bf16.mxu0 0
    %163 = vmatpush1.bf16.msra.mxu0 0
    %164 = vmatprep.subr.bf16.mxu0 0
    %165 = vmatpush1.bf16.msra.mxu0 0
    %166 = vmatprep.subr.bf16.mxu0 0
    %167 = vmatpush1.bf16.msra.mxu0 0
    %168 = vmatprep.mubr.bf16.mxu0 0
    %169 = vmatmul.mubr.bf16.gmra.mrb[0].mxu0 %v134
    %v170 = vpop.f32.mrb[0].mxu0
    %v171 = vadd.f32 %v124, %v170
    %v172 = vpop.f32.mrb[0].mxu0
    %v173 = vpop.f32.mrb[0].mxu0
    %v174 = vpop.f32.mrb[0].mxu0
    %175 = vdwg.mxu0
    %v176 = vtanh.pop %v171
    %v177 = vpack.c.bf16 %v176, %v176
    %v178 = vld [vmem:[#allocation8] sm:$0xf]
    %v179 = vld [vmem:[#allocation8 + $0x4] sm:$0xf]
    %v180 = vld [vmem:[#allocation8 + $0x8] sm:$0xf]
    %v181 = vld [vmem:[#allocation8 + $0xc] sm:$0xf]
    %v182 = vld [vmem:[#allocation8 + $0x10] sm:$0xf]
    %v183 = vld [vmem:[#allocation8 + $0x14] sm:$0xf]
    %v184 = vld [vmem:[#allocation8 + $0x18] sm:$0xf]
    %v185 = vld [vmem:[#allocation8 + $0x1c] sm:$0xf]
    %v186 = vld [vmem:[#allocation8 + $0x20] sm:$0xf]
    %v187 = vld [vmem:[#allocation8 + $0x24] sm:$0xf]
    %v188 = vld [vmem:[#allocation8 + $0x28] sm:$0xf]
    %v189 = vld [vmem:[#allocation8 + $0x2c] sm:$0xf]
    %v190 = vld [vmem:[#allocation8 + $0x30] sm:$0xf]
    %v191 = vld [vmem:[#allocation8 + $0x34] sm:$0xf]
    %v192 = vld [vmem:[#allocation8 + $0x38] sm:$0xf]
    %v193 = vld [vmem:[#allocation8 + $0x3c] sm:$0xf]
    %v194 = vld [vmem:[#allocation10] sm:$0x1]
    %v196 = vlaneseq
    %v197 = vshrl.u32 %v196, 7
    %v198 = vsub.s32 0, %v197
    %v199 = vrot.slane %v194, %v198
    %v217 = vunpack.c.l.b16 %v178
    %v218 = vunpack.c.l.b16 %v179
    %v219 = vunpack.c.l.b16 %v180
    %v220 = vunpack.c.l.b16 %v181
    %v221 = vunpack.c.l.b16 %v182
    %v222 = vunpack.c.l.b16 %v183
    %v223 = vunpack.c.l.b16 %v184
    %v224 = vunpack.c.l.b16 %v185
    %v225 = vunpack.c.l.b16 %v186
    %v226 = vunpack.c.l.b16 %v187
    %v227 = vunpack.c.l.b16 %v188
    %v228 = vunpack.c.l.b16 %v189
    %v229 = vunpack.c.l.b16 %v190
    %v230 = vunpack.c.l.b16 %v191
    %v231 = vunpack.c.l.b16 %v192
    %v232 = vunpack.c.l.b16 %v193
    %v233 = vpack.c.b16 %v218, %v217
    %v234 = vpack.c.b16 %v220, %v219
    %v235 = vpack.c.b16 %v222, %v221
    %v236 = vpack.c.b16 %v224, %v223
    %v237 = vpack.c.b16 %v226, %v225
    %v238 = vpack.c.b16 %v228, %v227
    %v239 = vpack.c.b16 %v230, %v229
    %v240 = vpack.c.b16 %v232, %v231
    %249 = vmatprep.subr.bf16.mxu0 0
    %250 = vmatpush1.bf16.msra.mxu0 %v233
    %251 = vmatprep.subr.bf16.mxu0 0
    %252 = vmatpush1.bf16.msra.mxu0 %v234
    %253 = vmatprep.subr.bf16.mxu0 0
    %254 = vmatpush1.bf16.msra.mxu0 %v235
    %255 = vmatprep.subr.bf16.mxu0 0
    %256 = vmatpush1.bf16.msra.mxu0 %v236
    %257 = vmatprep.subr.bf16.mxu0 0
    %258 = vmatpush1.bf16.msra.mxu0 %v237
    %259 = vmatprep.subr.bf16.mxu0 0
    %260 = vmatpush1.bf16.msra.mxu0 %v238
    %261 = vmatprep.subr.bf16.mxu0 0
    %262 = vmatpush1.bf16.msra.mxu0 %v239
    %263 = vmatprep.subr.bf16.mxu0 0
    %264 = vmatpush1.bf16.msra.mxu0 %v240
    %265 = vmatprep.subr.bf16.mxu0 0
    %266 = vmatpush1.bf16.msra.mxu0 0
    %267 = vmatprep.subr.bf16.mxu0 0
    %268 = vmatpush1.bf16.msra.mxu0 0
    %269 = vmatprep.subr.bf16.mxu0 0
    %270 = vmatpush1.bf16.msra.mxu0 0
    %271 = vmatprep.subr.bf16.mxu0 0
    %272 = vmatpush1.bf16.msra.mxu0 0
    %273 = vmatprep.subr.bf16.mxu0 0
    %274 = vmatpush1.bf16.msra.mxu0 0
    %275 = vmatprep.subr.bf16.mxu0 0
    %276 = vmatpush1.bf16.msra.mxu0 0
    %277 = vmatprep.subr.bf16.mxu0 0
    %278 = vmatpush1.bf16.msra.mxu0 0
    %279 = vmatprep.subr.bf16.mxu0 0
    %280 = vmatpush1.bf16.msra.mxu0 0
    %281 = vmatprep.mubr.bf16.mxu0 0
    %282 = vmatmul.mubr.bf16.gmra.mrb[0].mxu0 %v177
    %v283 = vpop.f32.mrb[0].mxu0
    %v284 = vadd.f32 %v199, %v283
    %v285 = vpop.f32.mrb[0].mxu0
    %v286 = vpop.f32.mrb[0].mxu0
    %v287 = vpop.f32.mrb[0].mxu0
    %288 = vdwg.mxu0
    %v289 = vtanh.pop %v284
    %v290 = vpack.c.bf16 %v289, %v289
    %v291 = vld [vmem:[#allocation11] sm:$0xf]
    %v292 = vld [vmem:[#allocation11 + $0x4] sm:$0xf]
    %v293 = vld [vmem:[#allocation11 + $0x8] sm:$0xf]
    %v294 = vld [vmem:[#allocation11 + $0xc] sm:$0xf]
    %v295 = vld [vmem:[#allocation11 + $0x10] sm:$0xf]
    %v296 = vld [vmem:[#allocation11 + $0x14] sm:$0xf]
    %v297 = vld [vmem:[#allocation11 + $0x18] sm:$0xf]
    %v298 = vld [vmem:[#allocation11 + $0x1c] sm:$0xf]
    %v299 = vld [vmem:[#allocation11 + $0x20] sm:$0xf]
    %v300 = vld [vmem:[#allocation11 + $0x24] sm:$0xf]
    %v301 = vld [vmem:[#allocation11 + $0x28] sm:$0xf]
    %v302 = vld [vmem:[#allocation11 + $0x2c] sm:$0xf]
    %v303 = vld [vmem:[#allocation11 + $0x30] sm:$0xf]
    %v304 = vld [vmem:[#allocation11 + $0x34] sm:$0xf]
    %v305 = vld [vmem:[#allocation11 + $0x38] sm:$0xf]
    %v306 = vld [vmem:[#allocation11 + $0x3c] sm:$0xf]
    %v307 = vld [vmem:[#allocation13] sm:$0x1]
    %v309 = vlaneseq
    %v310 = vshrl.u32 %v309, 7
    %v311 = vsub.s32 0, %v310
    %v312 = vrot.slane %v307, %v311
    %v330 = vunpack.c.l.b16 %v291
    %v331 = vunpack.c.l.b16 %v292
    %v332 = vunpack.c.l.b16 %v293
    %v333 = vunpack.c.l.b16 %v294
    %v334 = vunpack.c.l.b16 %v295
    %v335 = vunpack.c.l.b16 %v296
    %v336 = vunpack.c.l.b16 %v297
    %v337 = vunpack.c.l.b16 %v298
    %v338 = vunpack.c.l.b16 %v299
    %v339 = vunpack.c.l.b16 %v300
    %v340 = vunpack.c.l.b16 %v301
    %v341 = vunpack.c.l.b16 %v302
    %v342 = vunpack.c.l.b16 %v303
    %v343 = vunpack.c.l.b16 %v304
    %v344 = vunpack.c.l.b16 %v305
    %v345 = vunpack.c.l.b16 %v306
    %v346 = vpack.c.b16 %v331, %v330
    %v347 = vpack.c.b16 %v333, %v332
    %v348 = vpack.c.b16 %v335, %v334
    %v349 = vpack.c.b16 %v337, %v336
    %v350 = vpack.c.b16 %v339, %v338
    %v351 = vpack.c.b16 %v341, %v340
    %v352 = vpack.c.b16 %v343, %v342
    %v353 = vpack.c.b16 %v345, %v344
    %362 = vmatprep.subr.bf16.mxu0 0
    %363 = vmatpush1.bf16.msra.mxu0 %v346
    %364 = vmatprep.subr.bf16.mxu0 0
    %365 = vmatpush1.bf16.msra.mxu0 %v347
    %366 = vmatprep.subr.bf16.mxu0 0
    %367 = vmatpush1.bf16.msra.mxu0 %v348
    %368 = vmatprep.subr.bf16.mxu0 0
    %369 = vmatpush1.bf16.msra.mxu0 %v349
    %370 = vmatprep.subr.bf16.mxu0 0
    %371 = vmatpush1.bf16.msra.mxu0 %v350
    %372 = vmatprep.subr.bf16.mxu0 0
    %373 = vmatpush1.bf16.msra.mxu0 %v351
    %374 = vmatprep.subr.bf16.mxu0 0
    %375 = vmatpush1.bf16.msra.mxu0 %v352
    %376 = vmatprep.subr.bf16.mxu0 0
    %377 = vmatpush1.bf16.msra.mxu0 %v353
    %378 = vmatprep.subr.bf16.mxu0 0
    %379 = vmatpush1.bf16.msra.mxu0 0
    %380 = vmatprep.subr.bf16.mxu0 0
    %381 = vmatpush1.bf16.msra.mxu0 0
    %382 = vmatprep.subr.bf16.mxu0 0
    %383 = vmatpush1.bf16.msra.mxu0 0
    %384 = vmatprep.subr.bf16.mxu0 0
    %385 = vmatpush1.bf16.msra.mxu0 0
    %386 = vmatprep.subr.bf16.mxu0 0
    %387 = vmatpush1.bf16.msra.mxu0 0
    %388 = vmatprep.subr.bf16.mxu0 0
    %389 = vmatpush1.bf16.msra.mxu0 0
    %390 = vmatprep.subr.bf16.mxu0 0
    %391 = vmatpush1.bf16.msra.mxu0 0
    %392 = vmatprep.subr.bf16.mxu0 0
    %393 = vmatpush1.bf16.msra.mxu0 0
    %394 = vmatprep.mubr.bf16.mxu0 0
    %395 = vmatmul.mubr.bf16.gmra.mrb[0].mxu0 %v290
    %v396 = vpop.f32.mrb[0].mxu0
    %v397 = vadd.f32 %v312, %v396
    %v398 = vpop.f32.mrb[0].mxu0
    %v399 = vpop.f32.mrb[0].mxu0
    %v400 = vpop.f32.mrb[0].mxu0
    %401 = vdwg.mxu0
    %402 = vst [vmem:[#allocation14] sm:$0xf] %v397
    // Predicated region
    $region58: #{tpu_custom_call.1} parent=1 // pred_check
      _
    $region59: #{tpu_custom_call.1} parent=1 // pred_check_branch
      %404 = sbr.rel (0) target = $region61
    $region60: #{tpu_custom_call.1} parent=1 // pred_region
      %s406 = ssub.s32 64, 64
      %407 = vsyncadd [#allocation4], %s406
      %s409 = sshll.u32 [#allocation14], 4
      %s410 = int_to_ptr.vmem [resolvable:$true] %s409
      %412 = dma.vmem_to_hbm [thread:$0]  %s410, 64, %s7, [#allocation4]
    $region61: #{tpu_custom_call.1} parent=1 // pred_fallthru
      _
    // Predicated region
    $region62: #{tpu_custom_call.1} parent=1 // pred_check
      _
    $region63: #{tpu_custom_call.1} parent=1 // pred_check_branch
      %414 = sbr.rel (0) target = $region65
    $region64: #{tpu_custom_call.1} parent=1 // pred_region
      %415 = dma.done [#allocation4], 64
    $region65: #{tpu_custom_call.1} parent=1 // pred_fallthru
      _
    %416 = vsyncpa [#allocation3], 1
    %417 = vsyncpa [#allocation6], 1
    %418 = vsyncpa [#allocation9], 1
    %419 = vsyncpa [#allocation12], 1
    %420 = vsyncpa [#allocation4], 1

</llo_original>
